<compile_context>
chip_gen: v7x
topology: tpu7x:2x2x1
jax: 0.10.0
libtpu: 0.0.40
codegen_flags: <defaults>
</compile_context>

<pallas_src>
import jax
import jax.numpy as jnp
from jax.experimental import pallas as pl
from jax.experimental.pallas import tpu as pltpu

_LANES = 128
_SUBLANES = 8


def _round_up(a, b):
    return -(-a // b) * b


def _vmem_budget():
    """(target_block_bytes, vmem_limit_bytes) chosen per TPU generation."""
    try:
        vmem_cap = pltpu.get_tpu_info().vmem_capacity_bytes
    except Exception:  # unknown backend / API mismatch -> conservative
        vmem_cap = 64 * 1024 * 1024
    if vmem_cap >= 100 * 1024 * 1024:          # v5e / v6e: 128 MiB VMEM
        return 8 * 1024 * 1024, 64 * 1024 * 1024
    return 4 * 1024 * 1024, 32 * 1024 * 1024   # v7x (64 MiB) or unknown


def _choose_tiling(B, N, itemsize, target_block_bytes):
    """Pick (R, L, tile_r, tile_l, Bt) for the (B, R, L) zero-copy view."""
    if N % _LANES == 0:
        # Lane-dense slab, no padding needed.
        R, L = N // _LANES, _LANES
    else:
        # Rare fallback: keep the flattened sample on the lane axis.  Still
        # zero-copy; only costs some sublane under-utilization in VMEM.
        R, L = 1, N

    target_elems = max(1, target_block_bytes // itemsize)

    # Lane-axis tile: full L when it fits, else a 128-multiple (legal block).
    if L <= target_elems:
        tile_l = L
    else:
        tile_l = max(_LANES, (target_elems // _LANES) * _LANES)

    # Row-axis tile: full R when it fits, else a multiple of 8 (legal block);
    # the grid's partial edge block handles R % tile_r != 0 (no padding).
    if R == 1:
        tile_r = 1
    else:
        rows_budget = max(_SUBLANES, (target_elems // L // _SUBLANES) * _SUBLANES)
        tile_r = R if R <= rows_budget else rows_budget

    # Batch-axis tile: merge samples only when one sample fits in one tile.
    if tile_r == R and tile_l == L:
        per_sample_bytes = (_round_up(tile_r, _SUBLANES)
                            * _round_up(tile_l, _LANES) * itemsize)
        # + the (1,1) f32 scale element padded to one (8,128) VMEM tile.
        per_sample_bytes += _SUBLANES * _LANES * 4
        bt_budget = max(1, target_block_bytes // per_sample_bytes)
        # Pick the largest divisor of B within budget (keeps the leading
        # block dimension exact -- no edge block on the batch axis).
        Bt = 1
        for cand in range(min(B, bt_budget), 0, -1):
            if B % cand == 0:
                Bt = cand
                break
    else:
        Bt = 1
    return R, L, tile_r, tile_l, Bt


def _dropconnect_kernel(scale_ref, x_ref, o_ref):
    # scale_ref: (Bt, 1, 1) f32 per-sample scale (0.0 or 1/keep_prob)
    # x_ref/o_ref: (Bt, tile_r, tile_l) activation tiles
    xf = x_ref[...].astype(jnp.float32)
    o_ref[...] = (xf * scale_ref[...]).astype(o_ref.dtype)


def drop_connect(x, rand_u01, drop_rate, training=True):
    """DropConnect forward.

    x:        [B, ...] activations (e.g. BCHW).
    rand_u01: [B] uniform [0, 1) randoms (one per sample), any float dtype.
    """
    assert 0.0 <= drop_rate <= 1.0, "p must be in range of [0,1]"
    if not training:
        return x
    if drop_rate == 0.0:
        # keep_prob == 1 -> floor(1 + u) == 1 for all u in [0,1): identity.
        return x
    if drop_rate >= 1.0:
        # keep_prob == 0 -> every sample dropped; avoid 1/0 (inf * 0 -> NaN).
        return jnp.zeros_like(x)

    keep_prob = 1.0 - drop_rate
    orig_shape = x.shape
    B = x.shape[0]
    N = 1
    for d in x.shape[1:]:
        N *= d
    itemsize = jnp.dtype(x.dtype).itemsize

    # Per-sample scale, computed in f32 (exact floor boundary), O(B) work.
    binary = jnp.floor(keep_prob + rand_u01.astype(jnp.float32))
    scale3 = (binary * (1.0 / keep_prob)).reshape(B, 1, 1)

    target_block_bytes, vmem_limit = _vmem_budget()
    R, L, tile_r, tile_l, Bt = _choose_tiling(B, N, itemsize, target_block_bytes)

    x3 = x.reshape(B, R, L)  # zero-copy view; no jnp.pad, no output slice.

    grid = (pl.cdiv(B, Bt), pl.cdiv(R, tile_r), pl.cdiv(L, tile_l))

    out3 = pl.pallas_call(
        _dropconnect_kernel,
        out_shape=jax.ShapeDtypeStruct((B, R, L), x.dtype),
        grid=grid,
        in_specs=[
            pl.BlockSpec((Bt, 1, 1), lambda b, r, l: (b, 0, 0)),
            pl.BlockSpec((Bt, tile_r, tile_l), lambda b, r, l: (b, r, l)),
        ],
        out_specs=pl.BlockSpec((Bt, tile_r, tile_l), lambda b, r, l: (b, r, l)),
        # Reuse x's buffer for the output when the caller donates it.
        input_output_aliases={1: 0},
        cost_estimate=pl.CostEstimate(
            flops=B * N,
            transcendentals=0,
            bytes_accessed=2 * B * N * itemsize + B * 4,
        ),
        compiler_params=pltpu.CompilerParams(
            dimension_semantics=("parallel", "parallel", "parallel"),
            vmem_limit_bytes=vmem_limit,
        ),
    )(scale3, x3)

    return out3.reshape(orig_shape)


def _reference(x, rand_u01, drop_rate):
    keep_prob = 1.0 - drop_rate
    rand = rand_u01.reshape((-1,) + (1,) * (x.ndim - 1)).astype(jnp.float32)
    binary = jnp.floor(keep_prob + rand).astype(x.dtype)
    return x / keep_prob * binary


if __name__ == "__main__":
    key = jax.random.PRNGKey(0)
    kx, kr, kx2 = jax.random.split(key, 3)

    B, C, H, W = 2, 4, 16, 16
    drop_rate = 0.3

    x = jax.random.normal(kx, (B, C, H, W), dtype=jnp.float32)
    # Per-sample uniform randoms (what the PyTorch module draws with
    # torch.rand([B, 1, 1, 1])).
    rand_u01 = jax.random.uniform(kr, (B,), dtype=jnp.float32)

    dc = jax.jit(drop_connect, static_argnums=(2, 3))

    # Main path: C*H*W = 1024 is 128-aligned -> lane-dense (B, 8, 128) view.
    out = jax.block_until_ready(dc(x, rand_u01, drop_rate, True))
    ref = _reference(x, rand_u01, drop_rate)
    assert out.shape == x.shape and out.dtype == x.dtype
    assert jnp.allclose(out, ref, atol=1e-6, rtol=1e-6)

    # Unaligned per-sample size (3*5*7 = 105): exercises the pad-free
    # (B, 1, N) fallback layout.
    x_u = jax.random.normal(kx2, (2, 3, 5, 7), dtype=jnp.float32)
    out_u = jax.block_until_ready(dc(x_u, rand_u01, drop_rate, True))
    assert jnp.allclose(out_u, _reference(x_u, rand_u01, drop_rate),
                        atol=1e-6, rtol=1e-6)

    # Eval mode is identity.
    out_eval = drop_connect(x, rand_u01, drop_rate, training=False)
    assert jnp.array_equal(out_eval, x)

    # Edge cases: p == 0 (identity) and p == 1 (all zeros, no NaNs).
    out_p0 = jax.block_until_ready(drop_connect(x, rand_u01, 0.0, training=True))
    assert jnp.array_equal(out_p0, x)
    out_p1 = jax.block_until_ready(drop_connect(x, rand_u01, 1.0, training=True))
    assert jnp.array_equal(out_p1, jnp.zeros_like(x))

    print("KERNEL_OK")
</pallas_src>

<mosaic_0001>
module attributes {stable_mosaic.version = 11 : i64} {
  func.func @_dropconnect_kernel(%arg0: i32, %arg1: i32, %arg2: i32, %arg3: memref<2x1x1xf32, #tpu.memory_space<vmem>>, %arg4: memref<2x8x128xf32, #tpu.memory_space<vmem>>, %arg5: memref<2x8x128xf32, #tpu.memory_space<vmem>>) attributes {dimension_semantics = [#tpu.dimension_semantics<parallel>, #tpu.dimension_semantics<parallel>, #tpu.dimension_semantics<parallel>], iteration_bounds = array<i64: 1, 1, 1>, scalar_prefetch = 0 : i64, scratch_operands = 0 : i64, tpu.core_type = #tpu.core_type<tc>, window_params = [{transform_indices = @transform_0, window_bounds = array<i64: 2, 1, 1>}, {transform_indices = @transform_1, window_bounds = array<i64: 2, 8, 128>}, {transform_indices = @transform_2, window_bounds = array<i64: 2, 8, 128>}]} {
    %c0 = arith.constant 0 : index
    %c0_0 = arith.constant 0 : index
    %c0_1 = arith.constant 0 : index
    %0 = vector.load %arg4[%c0, %c0_0, %c0_1] : memref<2x8x128xf32, #tpu.memory_space<vmem>>, vector<2x8x128xf32>
    %c0_2 = arith.constant 0 : index
    %c0_3 = arith.constant 0 : index
    %c0_4 = arith.constant 0 : index
    %1 = vector.load %arg3[%c0_2, %c0_3, %c0_4] : memref<2x1x1xf32, #tpu.memory_space<vmem>>, vector<2x1x1xf32>
    %2 = vector.broadcast %1 : vector<2x1x1xf32> to vector<2x8x128xf32>
    %3 = arith.mulf %0, %2 : vector<2x8x128xf32>
    %c0_5 = arith.constant 0 : index
    %c0_6 = arith.constant 0 : index
    %c0_7 = arith.constant 0 : index
    %4 = vector.load %arg5[%c0_5, %c0_6, %c0_7] : memref<2x8x128xf32, #tpu.memory_space<vmem>>, vector<2x8x128xf32>
    tpu.vector_store %arg5[%c0_5, %c0_6, %c0_7], %3 {strides = array<i32>} : memref<2x8x128xf32, #tpu.memory_space<vmem>>, vector<2x8x128xf32>,
    return
  }
  func.func @transform_0(%arg0: i32, %arg1: i32, %arg2: i32) -> (i32, i32, i32) {
    %c0_i32 = arith.constant 0 : i32
    %c0_i32_0 = arith.constant 0 : i32
    %c0_i32_1 = arith.constant 0 : i32
    return %arg0, %c0_i32, %c0_i32_0 : i32, i32, i32
  }
  func.func @transform_1(%arg0: i32, %arg1: i32, %arg2: i32) -> (i32, i32, i32) {
    %c0_i32 = arith.constant 0 : i32
    return %arg0, %arg1, %arg2 : i32, i32, i32
  }
  func.func @transform_2(%arg0: i32, %arg1: i32, %arg2: i32) -> (i32, i32, i32) {
    %c0_i32 = arith.constant 0 : i32
    return %arg0, %arg1, %arg2 : i32, i32, i32
  }
}

</mosaic_0001>

<llo_original>
// kernel: drop_connect.1
$region0: #{drop_connect.1}
  #allocation0 [shape = 'u32[]', space=smem, size = 0x4, offset = 0x4, fixed_abs, tag = 'smem constant byte address 0x4 - core index']
  #allocation1 [shape = 'u32[144,128]{1,0:T(1,128)}', space=vmem, size = 0x12000, scoped, tag = 'internal scratch']
  %s0 = inlined_call_operand.vmem [shape: f32[2,1,1], index: 0, kind: input, shape index: {}]
  %s1 = inlined_call_operand.vmem [shape: f32[2,8,128], index: 1, kind: input, shape index: {}, may-alias: {1,2}]
  %s2 = inlined_call_operand.vmem [shape: f32[2,8,128], index: 2, kind: output, shape index: {}, may-alias: {1,2}]
  %s3 = sld [smem:[#allocation0]]
  $region18: #{drop_connect.1} parent=0
    _
  %s5 = ssub.s32 1, %s3
  %s6 = scalar_select 0, %s5, %s3
  // Predicated region
  $region2: #{drop_connect.1} parent=0 // pred_check
    _
  $region3: #{drop_connect.1} parent=0 // pred_check_branch
    %8 = sbr.rel (0) target = $region5
  $region4: #{drop_connect.1} parent=0 // pred_region
    _
  $region5: #{drop_connect.1} parent=0 // pred_fallthru
    _
  // Predicated region
  $region6: #{drop_connect.1} parent=0 // pred_check
    _
  $region7: #{drop_connect.1} parent=0 // pred_check_branch
    %10 = sbr.rel (0) target = $region9
  $region8: #{drop_connect.1} parent=0 // pred_region
    _
  $region9: #{drop_connect.1} parent=0 // pred_fallthru
    _
  %v11 = vld [vmem:[%s1] sm:$0xff]
  %v12 = vld [vmem:[%s1 + $0x8] sm:$0xff]
  %v13 = vld [vmem:[%s0] sm:$0x1]
  %v14 = vld [vmem:[%s0 + $0x1] sm:$0x1]
  %v17 = vlaneseq
  %v18 = vshrl.u32 %v17, 7
  %v19 = vsub.s32 0, %v18
  %v20 = vrot.slane %v13, %v19
  %v21 = vlaneseq
  %v22 = vshrl.u32 %v21, 7
  %v23 = vsub.s32 0, %v22
  %v24 = vrot.slane %v14, %v23
  %25 = vset.pattern.permute.xlu0 0
  %26 = vperm.xlu0 %25, %v20
  %v27 = vpop.permute.xlu0 %26
  %29 = vset.pattern.permute.xlu0 0
  %30 = vperm.xlu0 %29, %v24
  %v31 = vpop.permute.xlu0 %30
  %v33 = vmul.f32 %v11, %v27
  %v34 = vmul.f32 %v12, %v31
  %35 = vst [vmem:[%s2] sm:$0xff] %v33
  %36 = vst [vmem:[%s2 + $0x8] sm:$0xff] %v34
  // Predicated region
  $region10: #{drop_connect.1} parent=0 // pred_check
    _
  $region11: #{drop_connect.1} parent=0 // pred_check_branch
    %38 = sbr.rel (0) target = $region13
  $region12: #{drop_connect.1} parent=0 // pred_region
    _
  $region13: #{drop_connect.1} parent=0 // pred_fallthru
    _
  // Predicated region
  $region14: #{drop_connect.1} parent=0 // pred_check
    _
  $region15: #{drop_connect.1} parent=0 // pred_check_branch
    %40 = sbr.rel (0) target = $region17
  $region16: #{drop_connect.1} parent=0 // pred_region
    _
  $region17: #{drop_connect.1} parent=0 // pred_fallthru
    _

</llo_original>
